<compile_context>
chip_gen: v5e
topology: v5e:2x2
jax: 0.10.0
libtpu: 0.0.40
codegen_flags: <defaults>
</compile_context>

<pallas_src>
import jax
import jax.numpy as jnp
from jax.experimental import pallas as pl
from jax.experimental.pallas import tpu as pltpu


def _erf_approx(x):
    # Abramowitz & Stegun 7.1.26 rational approximation of erf, |err| < 1.5e-7
    # (fp32-exact for our purposes).  Built only from ops guaranteed to lower
    # on the TPU VPU/EUP (exp / mul / add / div / where).
    a1, a2, a3, a4, a5 = 0.254829592, -0.284496736, 1.421413741, -1.453152027, 1.061405429
    p = 0.3275911
    sign = jnp.where(x >= 0.0, 1.0, -1.0)
    ax = jnp.abs(x)
    # Exact divide kept on purpose: the kernel is memory-bound, VALU slots are
    # not the binding unit, and the approximate EUP reciprocal would eat into
    # the fp32 error budget for no measurable gain.
    t = 1.0 / (1.0 + p * ax)
    poly = ((((a5 * t + a4) * t + a3) * t + a2) * t + a1) * t
    y = 1.0 - poly * jnp.exp(-ax * ax)
    return sign * y


def conv_mlp_kernel(x_ref, w1_ref, b1_ref, w2_ref, b2_ref, o_ref):
    # x_ref : (Cin, TM)   channels-first pixel tile (pixels = lane axis)
    # w1_ref: (hidden, Cin)   b1_ref: (hidden, 1)
    # w2_ref: (Cout, hidden)  b2_ref: (Cout, 1)
    # o_ref : (Cout, TM)
    x = x_ref[...]
    h = jnp.dot(w1_ref[...], x, preferred_element_type=jnp.float32) + b1_ref[...]
    # exact (erf-based) GELU, matching torch.nn.GELU() default, f32 math
    h = 0.5 * h * (1.0 + _erf_approx(h * 0.7071067811865476))
    # drop1: p = 0.0 -> identity
    y = jnp.dot(w2_ref[...], h, preferred_element_type=jnp.float32) + b2_ref[...]
    # drop2: p = 0.0 -> identity
    o_ref[...] = y.astype(o_ref.dtype)


def conv_forward(x_nchw, w1, b1, w2, b2, *, max_tm=2048):
    """Forward pass of the `Conv` module as a single Pallas kernel.

    x_nchw: (N, Cin, H, W)                       -- PyTorch NCHW input
    w1:     (hidden, Cin, 1, 1), b1: (hidden,)   -- conv1 params
    w2:     (Cout, hidden, 1, 1), b2: (Cout,)    -- conv2 params
    returns (N, Cout, H, W)
    """
    N, Cin, H, W = x_nchw.shape
    hidden = w1.shape[0]
    Cout = w2.shape[0]
    HW = H * W

    # Channels-first: NCHW -> (N, Cin, H*W) is a pure reshape (no HBM traffic).
    x3d = x_nchw.reshape(N, Cin, HW)
    w1m = w1.reshape(hidden, Cin)
    w2m = w2.reshape(Cout, hidden)
    b1c = b1.reshape(hidden, 1)
    b2c = b2.reshape(Cout, 1)

    # Pixel tile: as large as practical (per-grid-step overhead ~0.35 us,
    # mem-bound streaming kernel).  Lane axis is either the full spatial
    # extent or a multiple of 512 (=> multiple of 128/256 for v5e/v6e/v7x MXU
    # and unmasked stores).  VMEM per tile at these channel counts is well
    # under 1 MiB even at tm=2048, so double-buffered in/out + the (hidden,TM)
    # intermediate fit comfortably in v7x's 64 MiB (32 MiB scoped) VMEM.
    if HW <= max_tm:
        tm = HW
    else:
        tm = max_tm  # multiple of 512; partial last tile handled by Pallas

    grid = (N, pl.cdiv(HW, tm))  # batch axis keeps the grid >= 2 steps, so
    #                              both v7x TensorCores get "parallel" work.

    y3d = pl.pallas_call(
        conv_mlp_kernel,
        out_shape=jax.ShapeDtypeStruct((N, Cout, HW), x_nchw.dtype),
        grid_spec=pltpu.PrefetchScalarGridSpec(
            num_scalar_prefetch=0,
            grid=grid,
            in_specs=[
                # pixel tile: batch dim squeezed, (Cin, tm) in the kernel
                pl.BlockSpec((None, Cin, tm), lambda n, i: (n, 0, i)),
                # weights / biases: constant-index blocks -> fetched once,
                # resident in VMEM across the whole grid
                pl.BlockSpec((hidden, Cin), lambda n, i: (0, 0)),
                pl.BlockSpec((hidden, 1), lambda n, i: (0, 0)),
                pl.BlockSpec((Cout, hidden), lambda n, i: (0, 0)),
                pl.BlockSpec((Cout, 1), lambda n, i: (0, 0)),
            ],
            out_specs=pl.BlockSpec((None, Cout, tm), lambda n, i: (n, 0, i)),
        ),
        compiler_params=pltpu.CompilerParams(
            dimension_semantics=("parallel", "parallel")),
    )(x3d, w1m, b1c, w2m, b2c)

    return y3d.reshape(N, Cout, H, W)


if __name__ == "__main__":
    key = jax.random.PRNGKey(0)
    N, Cin, H, W = 2, 4, 16, 16
    hidden, Cout = 32, 4                       # hidden_C=32, out_C=in_C=4

    k1, k2, k3, k4, k5 = jax.random.split(key, 5)
    x = jax.random.normal(k1, (N, Cin, H, W), jnp.float32)

    # Deterministic synthetic parameters (PyTorch Conv2d default init scale).
    bound1 = 1.0 / (Cin ** 0.5)
    w1 = jax.random.uniform(k2, (hidden, Cin, 1, 1), jnp.float32, -bound1, bound1)
    b1 = jax.random.uniform(k3, (hidden,), jnp.float32, -bound1, bound1)
    bound2 = 1.0 / (hidden ** 0.5)
    w2 = jax.random.uniform(k4, (Cout, hidden, 1, 1), jnp.float32, -bound2, bound2)
    b2 = jax.random.uniform(k5, (Cout,), jnp.float32, -bound2, bound2)

    y = jax.jit(conv_forward)(x, w1, b1, w2, b2)
    y = jax.block_until_ready(y)

    # Plain-JAX reference (exact erf GELU) for a sanity check.
    h = jnp.einsum("oc,nchw->nohw", w1.reshape(hidden, Cin), x) + b1[None, :, None, None]
    h = jax.nn.gelu(h, approximate=False)
    ref = jnp.einsum("oc,nchw->nohw", w2.reshape(Cout, hidden), h) + b2[None, :, None, None]

    assert jnp.allclose(y, ref, atol=1e-4, rtol=1e-4), float(jnp.max(jnp.abs(y - ref)))

    print("KERNEL_OK")
</pallas_src>

<mosaic_0001>
module attributes {stable_mosaic.version = 11 : i64} {
  func.func @conv_mlp_kernel(%arg0: i32, %arg1: i32, %arg2: memref<1x4x256xf32, #tpu.memory_space<vmem>>, %arg3: memref<32x4xf32, #tpu.memory_space<vmem>>, %arg4: memref<32x1xf32, #tpu.memory_space<vmem>>, %arg5: memref<4x32xf32, #tpu.memory_space<vmem>>, %arg6: memref<4x1xf32, #tpu.memory_space<vmem>>, %arg7: memref<1x4x256xf32, #tpu.memory_space<vmem>>) attributes {dimension_semantics = [#tpu.dimension_semantics<parallel>, #tpu.dimension_semantics<parallel>], iteration_bounds = array<i64: 2, 1>, scalar_prefetch = 0 : i64, scratch_operands = 0 : i64, tpu.core_type = #tpu.core_type<tc>, window_params = [{transform_indices = @transform_0, window_bounds = array<i64: 1, 4, 256>}, {pipeline_mode = #tpu.pipeline_mode<synchronous>, transform_indices = @transform_1, window_bounds = array<i64: 32, 4>}, {pipeline_mode = #tpu.pipeline_mode<synchronous>, transform_indices = @transform_2, window_bounds = array<i64: 32, 1>}, {pipeline_mode = #tpu.pipeline_mode<synchronous>, transform_indices = @transform_3, window_bounds = array<i64: 4, 32>}, {pipeline_mode = #tpu.pipeline_mode<synchronous>, transform_indices = @transform_4, window_bounds = array<i64: 4, 1>}, {transform_indices = @transform_5, window_bounds = array<i64: 1, 4, 256>}]} {
    %c0 = arith.constant 0 : index
    %c0_0 = arith.constant 0 : index
    %c0_1 = arith.constant 0 : index
    %0 = vector.load %arg2[%c0, %c0_0, %c0_1] : memref<1x4x256xf32, #tpu.memory_space<vmem>>, vector<1x4x256xf32>
    %1 = vector.shape_cast %0 : vector<1x4x256xf32> to vector<4x256xf32>
    %c0_2 = arith.constant 0 : index
    %c0_3 = arith.constant 0 : index
    %2 = vector.load %arg3[%c0_2, %c0_3] : memref<32x4xf32, #tpu.memory_space<vmem>>, vector<32x4xf32>
    %cst = arith.constant dense<0.000000e+00> : vector<32x256xf32>
    %3 = tpu.matmul %2, %1, %cst {dimension_numbers = #tpu.dot_dimension_numbers<[1], [0], [0], [1], [0, 0, 1, 1], [], []>} : vector<32x4xf32>, vector<4x256xf32>, vector<32x256xf32> -> vector<32x256xf32>
    %c0_4 = arith.constant 0 : index
    %c0_5 = arith.constant 0 : index
    %4 = vector.load %arg4[%c0_4, %c0_5] : memref<32x1xf32, #tpu.memory_space<vmem>>, vector<32x1xf32>
    %5 = vector.broadcast %4 : vector<32x1xf32> to vector<32x256xf32>
    %6 = arith.addf %3, %5 : vector<32x256xf32>
    %cst_6 = arith.constant 5.000000e-01 : f32
    %7 = vector.broadcast %cst_6 : f32 to vector<32x256xf32>
    %8 = arith.mulf %7, %6 : vector<32x256xf32>
    %cst_7 = arith.constant 0.707106769 : f32
    %9 = vector.broadcast %cst_7 : f32 to vector<32x256xf32>
    %10 = arith.mulf %6, %9 : vector<32x256xf32>
    %cst_8 = arith.constant 0.000000e+00 : f32
    %11 = vector.broadcast %cst_8 : f32 to vector<32x256xf32>
    %12 = arith.cmpf oge, %10, %11 : vector<32x256xf32>
    %cst_9 = arith.constant 1.000000e+00 : f32
    %cst_10 = arith.constant -1.000000e+00 : f32
    %13 = vector.broadcast %cst_9 : f32 to vector<32x256xf32>
    %14 = vector.broadcast %cst_10 : f32 to vector<32x256xf32>
    %15 = arith.select %12, %13, %14 : vector<32x256xi1>, vector<32x256xf32>
    %16 = math.absf %10 : vector<32x256xf32>
    %cst_11 = arith.constant 0.327591091 : f32
    %17 = vector.broadcast %cst_11 : f32 to vector<32x256xf32>
    %18 = arith.mulf %17, %16 : vector<32x256xf32>
    %cst_12 = arith.constant 1.000000e+00 : f32
    %19 = vector.broadcast %cst_12 : f32 to vector<32x256xf32>
    %20 = arith.addf %19, %18 : vector<32x256xf32>
    %cst_13 = arith.constant 1.000000e+00 : f32
    %21 = vector.broadcast %cst_13 : f32 to vector<32x256xf32>
    %22 = arith.divf %21, %20 : vector<32x256xf32>
    %cst_14 = arith.constant 1.06140542 : f32
    %23 = vector.broadcast %cst_14 : f32 to vector<32x256xf32>
    %24 = arith.mulf %23, %22 : vector<32x256xf32>
    %cst_15 = arith.constant -1.45315206 : f32
    %25 = vector.broadcast %cst_15 : f32 to vector<32x256xf32>
    %26 = arith.addf %24, %25 : vector<32x256xf32>
    %27 = arith.mulf %26, %22 : vector<32x256xf32>
    %cst_16 = arith.constant 1.42141378 : f32
    %28 = vector.broadcast %cst_16 : f32 to vector<32x256xf32>
    %29 = arith.addf %27, %28 : vector<32x256xf32>
    %30 = arith.mulf %29, %22 : vector<32x256xf32>
    %cst_17 = arith.constant -0.284496725 : f32
    %31 = vector.broadcast %cst_17 : f32 to vector<32x256xf32>
    %32 = arith.addf %30, %31 : vector<32x256xf32>
    %33 = arith.mulf %32, %22 : vector<32x256xf32>
    %cst_18 = arith.constant 0.254829586 : f32
    %34 = vector.broadcast %cst_18 : f32 to vector<32x256xf32>
    %35 = arith.addf %33, %34 : vector<32x256xf32>
    %36 = arith.mulf %35, %22 : vector<32x256xf32>
    %cst_19 = arith.constant 0.000000e+00 : f32
    %37 = vector.broadcast %cst_19 : f32 to vector<32x256xf32>
    %38 = arith.subf %37, %16 : vector<32x256xf32>
    %39 = arith.mulf %38, %16 : vector<32x256xf32>
    %40 = math.exp %39 : vector<32x256xf32>
    %41 = arith.mulf %36, %40 : vector<32x256xf32>
    %cst_20 = arith.constant 1.000000e+00 : f32
    %42 = vector.broadcast %cst_20 : f32 to vector<32x256xf32>
    %43 = arith.subf %42, %41 : vector<32x256xf32>
    %44 = arith.mulf %15, %43 : vector<32x256xf32>
    %cst_21 = arith.constant 1.000000e+00 : f32
    %45 = vector.broadcast %cst_21 : f32 to vector<32x256xf32>
    %46 = arith.addf %45, %44 : vector<32x256xf32>
    %47 = arith.mulf %8, %46 : vector<32x256xf32>
    %c0_22 = arith.constant 0 : index
    %c0_23 = arith.constant 0 : index
    %48 = vector.load %arg5[%c0_22, %c0_23] : memref<4x32xf32, #tpu.memory_space<vmem>>, vector<4x32xf32>
    %cst_24 = arith.constant dense<0.000000e+00> : vector<4x256xf32>
    %49 = tpu.matmul %48, %47, %cst_24 {dimension_numbers = #tpu.dot_dimension_numbers<[1], [0], [0], [1], [0, 0, 1, 1], [], []>} : vector<4x32xf32>, vector<32x256xf32>, vector<4x256xf32> -> vector<4x256xf32>
    %c0_25 = arith.constant 0 : index
    %c0_26 = arith.constant 0 : index
    %50 = vector.load %arg6[%c0_25, %c0_26] : memref<4x1xf32, #tpu.memory_space<vmem>>, vector<4x1xf32>
    %51 = vector.broadcast %50 : vector<4x1xf32> to vector<4x256xf32>
    %52 = arith.addf %49, %51 : vector<4x256xf32>
    %c0_27 = arith.constant 0 : index
    %c0_28 = arith.constant 0 : index
    %c0_29 = arith.constant 0 : index
    %53 = vector.load %arg7[%c0_27, %c0_28, %c0_29] : memref<1x4x256xf32, #tpu.memory_space<vmem>>, vector<1x4x256xf32>
    %54 = vector.shape_cast %53 : vector<1x4x256xf32> to vector<4x256xf32>
    %55 = vector.shape_cast %52 : vector<4x256xf32> to vector<1x4x256xf32>
    tpu.vector_store %arg7[%c0_27, %c0_28, %c0_29], %55 {strides = array<i32>} : memref<1x4x256xf32, #tpu.memory_space<vmem>>, vector<1x4x256xf32>,
    return
  }
  func.func @transform_0(%arg0: i32, %arg1: i32) -> (i32, i32, i32) {
    %c0_i32 = arith.constant 0 : i32
    %c0_i32_0 = arith.constant 0 : i32
    return %arg0, %c0_i32, %arg1 : i32, i32, i32
  }
  func.func @transform_1(%arg0: i32, %arg1: i32) -> (i32, i32) {
    %c0_i32 = arith.constant 0 : i32
    %c0_i32_0 = arith.constant 0 : i32
    %c0_i32_1 = arith.constant 0 : i32
    return %c0_i32, %c0_i32_0 : i32, i32
  }
  func.func @transform_2(%arg0: i32, %arg1: i32) -> (i32, i32) {
    %c0_i32 = arith.constant 0 : i32
    %c0_i32_0 = arith.constant 0 : i32
    %c0_i32_1 = arith.constant 0 : i32
    return %c0_i32, %c0_i32_0 : i32, i32
  }
  func.func @transform_3(%arg0: i32, %arg1: i32) -> (i32, i32) {
    %c0_i32 = arith.constant 0 : i32
    %c0_i32_0 = arith.constant 0 : i32
    %c0_i32_1 = arith.constant 0 : i32
    return %c0_i32, %c0_i32_0 : i32, i32
  }
  func.func @transform_4(%arg0: i32, %arg1: i32) -> (i32, i32) {
    %c0_i32 = arith.constant 0 : i32
    %c0_i32_0 = arith.constant 0 : i32
    %c0_i32_1 = arith.constant 0 : i32
    return %c0_i32, %c0_i32_0 : i32, i32
  }
  func.func @transform_5(%arg0: i32, %arg1: i32) -> (i32, i32, i32) {
    %c0_i32 = arith.constant 0 : i32
    %c0_i32_0 = arith.constant 0 : i32
    return %arg0, %c0_i32, %arg1 : i32, i32, i32
  }
}

</mosaic_0001>

<llo_original>
// kernel: conv_forward.1
$region0: #{conv_forward.1}
  #allocation0 [shape = 'u32[]', space=smem, size = 0x4, offset = 0x4, fixed_abs, tag = 'smem constant byte address 0x4 - core index']
  #allocation1 [shape = 'u32[72,128]{1,0:T(1,128)}', space=vmem, size = 0x9000, scoped, tag = 'internal scratch']
  %s0 = inlined_call_operand.vmem [shape: f32[2,4,256], index: 0, kind: input, shape index: {}]
  %s1 = inlined_call_operand.vmem [shape: f32[32,4], index: 1, kind: input, shape index: {}]
  %s2 = inlined_call_operand.vmem [shape: f32[32,1], index: 2, kind: input, shape index: {}]
  %s3 = inlined_call_operand.vmem [shape: f32[4,32], index: 3, kind: input, shape index: {}]
  %s4 = inlined_call_operand.vmem [shape: f32[4,1], index: 4, kind: input, shape index: {}]
  %s5 = inlined_call_operand.vmem [shape: f32[2,4,256], index: 5, kind: output, shape index: {}]
  %s6 = sld [smem:[#allocation0]]
  $region53: #{conv_forward.1} parent=0
    _
  %s8 = ssub.s32 1, %s6
  %s9 = scalar_select 0, %s8, %s6
  loop: start=0, step=1, limit=4
  $region2: #{conv_forward.1} parent=0 // loop_pre_header
    _
  $region3: #{conv_forward.1} parent=0 // loop_header
    %s11 = sphi 0, %s15
    %p12 = scmp.ge.s32.totalorder %s11, 4
    %s18 = sphi 0, %s30
    %s19 = sphi 0, %s26
    %s20 = sphi 0, %s18
    %s21 = sphi 0, %s19
    %s22 = sphi 0, %s20
    %s23 = sphi 0, %s21
    %s35 = sphi 0, %s37
    %s38 = sphi 0, %s35
    %s39 = sphi 0, %s38
    %s55 = sphi 0, %s39
    %s59 = sphi 0, %s59
    %s61 = sphi 0, %s59
    %s62 = sphi 0, %s61
    %s76 = sphi 0, %s62
    %s80 = sphi 0, %s80
    %s82 = sphi 0, %s80
    %s83 = sphi 0, %s82
    %s97 = sphi 0, %s83
    %s101 = sphi 0, %s101
    %s103 = sphi 0, %s101
    %s104 = sphi 0, %s103
    %s118 = sphi 0, %s104
    %s122 = sphi 0, %s122
    %s124 = sphi 0, %s122
    %s125 = sphi 0, %s124
    %s139 = sphi 0, %s125
    %s147 = sphi 0, %s149
    %s150 = sphi 0, %s147
    %s151 = sphi 0, %s150
    %s167 = sphi 0, %s151
  $region4: #{conv_forward.1} parent=0 // loop_header_branch
    %14 = sbr.rel (%p12) target = $region8
  $region5: #{conv_forward.1} parent=0 // loop_body
    %s16 = ssub.s32 %s11, 1
    %s17 = ssub.s32 %s11, 2
    %s24 = sadd.s32 1, %s19
    %p25 = scmp.ge.s32.totalorder %s24, 1
    %s26 = scalar_select %p25, 0, %s24
    %s27 = sadd.s32 1, %s18
    %s28 = scalar_select %p25, %s27, %s18
    %p29 = scmp.ge.s32.totalorder %s28, 2
    %s30 = scalar_select %p29, 0, %s28
    %s31 = ssub.s32 %s18, %s30
    %s32 = ssub.s32 %s19, %s26
    %s33 = sor.u32 %s31, %s32
    %p34 = scmp.eq.s32.totalorder %s33, 0
    %s36 = sadd.s32 %s35, 1
    %s37 = scalar_select %p34, %s35, %s36
    %p40 = pneg %p34
    %p41 = scmp.eq.s32.totalorder %s11, 1
    %p42 = por %p40, %p41
    %p43 = scmp.ne.s32.totalorder %s35, %s38
    %p44 = scmp.eq.s32.totalorder %s11, 0
    %p45 = por %p43, %p44
    %p46 = scmp.ne.s32.totalorder %s35, %s38
    %p47 = scmp.eq.s32.totalorder %s16, 1
    %p48 = por %p46, %p47
    %p49 = scmp.ne.s32.totalorder %s38, %s39
    %p50 = scmp.eq.s32.totalorder %s16, 0
    %p51 = por %p49, %p50
    %p52 = scmp.ne.s32.totalorder %s38, %s39
    %p53 = scmp.eq.s32.totalorder %s17, 1
    %p54 = por %p52, %p53
    %p56 = scmp.ne.s32.totalorder %s39, %s55
    %p57 = scmp.eq.s32.totalorder %s17, 0
    %p58 = por %p56, %p57
    %s60 = sadd.s32 %s59, 1
    %p63 = scmp.eq.s32.totalorder %s11, 1
    %p64 = scmp.ne.s32.totalorder %s59, %s61
    %p65 = scmp.eq.s32.totalorder %s11, 0
    %p66 = por %p64, %p65
    %p67 = scmp.ne.s32.totalorder %s59, %s61
    %p68 = scmp.eq.s32.totalorder %s16, 1
    %p69 = por %p67, %p68
    %p70 = scmp.ne.s32.totalorder %s61, %s62
    %p71 = scmp.eq.s32.totalorder %s16, 0
    %p72 = por %p70, %p71
    %p73 = scmp.ne.s32.totalorder %s61, %s62
    %p74 = scmp.eq.s32.totalorder %s17, 1
    %p75 = por %p73, %p74
    %p77 = scmp.ne.s32.totalorder %s62, %s76
    %p78 = scmp.eq.s32.totalorder %s17, 0
    %p79 = por %p77, %p78
    %s81 = sadd.s32 %s80, 1
    %p84 = scmp.eq.s32.totalorder %s11, 1
    %p85 = scmp.ne.s32.totalorder %s80, %s82
    %p86 = scmp.eq.s32.totalorder %s11, 0
    %p87 = por %p85, %p86
    %p88 = scmp.ne.s32.totalorder %s80, %s82
    %p89 = scmp.eq.s32.totalorder %s16, 1
    %p90 = por %p88, %p89
    %p91 = scmp.ne.s32.totalorder %s82, %s83
    %p92 = scmp.eq.s32.totalorder %s16, 0
    %p93 = por %p91, %p92
    %p94 = scmp.ne.s32.totalorder %s82, %s83
    %p95 = scmp.eq.s32.totalorder %s17, 1
    %p96 = por %p94, %p95
    %p98 = scmp.ne.s32.totalorder %s83, %s97
    %p99 = scmp.eq.s32.totalorder %s17, 0
    %p100 = por %p98, %p99
    %s102 = sadd.s32 %s101, 1
    %p105 = scmp.eq.s32.totalorder %s11, 1
    %p106 = scmp.ne.s32.totalorder %s101, %s103
    %p107 = scmp.eq.s32.totalorder %s11, 0
    %p108 = por %p106, %p107
    %p109 = scmp.ne.s32.totalorder %s101, %s103
    %p110 = scmp.eq.s32.totalorder %s16, 1
    %p111 = por %p109, %p110
    %p112 = scmp.ne.s32.totalorder %s103, %s104
    %p113 = scmp.eq.s32.totalorder %s16, 0
    %p114 = por %p112, %p113
    %p115 = scmp.ne.s32.totalorder %s103, %s104
    %p116 = scmp.eq.s32.totalorder %s17, 1
    %p117 = por %p115, %p116
    %p119 = scmp.ne.s32.totalorder %s104, %s118
    %p120 = scmp.eq.s32.totalorder %s17, 0
    %p121 = por %p119, %p120
    %s123 = sadd.s32 %s122, 1
    %p126 = scmp.eq.s32.totalorder %s11, 1
    %p127 = scmp.ne.s32.totalorder %s122, %s124
    %p128 = scmp.eq.s32.totalorder %s11, 0
    %p129 = por %p127, %p128
    %p130 = scmp.ne.s32.totalorder %s122, %s124
    %p131 = scmp.eq.s32.totalorder %s16, 1
    %p132 = por %p130, %p131
    %p133 = scmp.ne.s32.totalorder %s124, %s125
    %p134 = scmp.eq.s32.totalorder %s16, 0
    %p135 = por %p133, %p134
    %p136 = scmp.ne.s32.totalorder %s124, %s125
    %p137 = scmp.eq.s32.totalorder %s17, 1
    %p138 = por %p136, %p137
    %p140 = scmp.ne.s32.totalorder %s125, %s139
    %p141 = scmp.eq.s32.totalorder %s17, 0
    %p142 = por %p140, %p141
    %s143 = ssub.s32 %s18, %s30
    %s144 = ssub.s32 %s19, %s26
    %s145 = sor.u32 %s143, %s144
    %p146 = scmp.eq.s32.totalorder %s145, 0
    %s148 = sadd.s32 %s147, 1
    %s149 = scalar_select %p146, %s147, %s148
    %p152 = pneg %p146
    %p153 = scmp.eq.s32.totalorder %s11, 1
    %p154 = por %p152, %p153
    %p155 = scmp.ne.s32.totalorder %s147, %s150
    %p156 = scmp.eq.s32.totalorder %s11, 0
    %p157 = por %p155, %p156
    %p158 = scmp.ne.s32.totalorder %s147, %s150
    %p159 = scmp.eq.s32.totalorder %s16, 1
    %p160 = por %p158, %p159
    %p161 = scmp.ne.s32.totalorder %s150, %s151
    %p162 = scmp.eq.s32.totalorder %s16, 0
    %p163 = por %p161, %p162
    %p164 = scmp.ne.s32.totalorder %s150, %s151
    %p165 = scmp.eq.s32.totalorder %s17, 1
    %p166 = por %p164, %p165
    %p168 = scmp.ne.s32.totalorder %s151, %s167
    %p169 = scmp.eq.s32.totalorder %s17, 0
    %p170 = por %p168, %p169
    %p171 = scmp.le.s32.totalorder 1, %s11
    %p172 = scmp.lt.s32.totalorder %s11, 3
    %p173 = pnand %p171, %p172
    %p174 = pneg %p173
    // Predicated region
    $region9: #{conv_forward.1} parent=5 // pred_check
      _
    $region10: #{conv_forward.1} parent=5 // pred_check_branch
      %176 = sbr.rel (%p173) target = $region12
    $region11: #{conv_forward.1} parent=5 // pred_region
      %s177 = ssub.s32 %s11, 1
      // Predicated region
      $region13: #{conv_forward.1} parent=11 // pred_check
        %p178 = pneg %p72
      $region14: #{conv_forward.1} parent=11 // pred_check_branch
        %180 = sbr.rel (%p178) target = $region16
      $region15: #{conv_forward.1} parent=11 // pred_region
        _
      $region16: #{conv_forward.1} parent=11 // pred_fallthru
        _
      // Predicated region
      $region17: #{conv_forward.1} parent=11 // pred_check
        %p181 = pneg %p93
      $region18: #{conv_forward.1} parent=11 // pred_check_branch
        %183 = sbr.rel (%p181) target = $region20
      $region19: #{conv_forward.1} parent=11 // pred_region
        _
      $region20: #{conv_forward.1} parent=11 // pred_fallthru
        _
      // Predicated region
      $region21: #{conv_forward.1} parent=11 // pred_check
        %p184 = pneg %p114
      $region22: #{conv_forward.1} parent=11 // pred_check_branch
        %186 = sbr.rel (%p184) target = $region24
      $region23: #{conv_forward.1} parent=11 // pred_region
        _
      $region24: #{conv_forward.1} parent=11 // pred_fallthru
        _
      // Predicated region
      $region25: #{conv_forward.1} parent=11 // pred_check
        %p187 = pneg %p135
      $region26: #{conv_forward.1} parent=11 // pred_check_branch
        %189 = sbr.rel (%p187) target = $region28
      $region27: #{conv_forward.1} parent=11 // pred_region
        _
      $region28: #{conv_forward.1} parent=11 // pred_fallthru
        _
    $region12: #{conv_forward.1} parent=5 // pred_fallthru
      _
    %p190 = scmp.lt.s32.totalorder %s11, 2
    // Predicated region
    $region29: #{conv_forward.1} parent=5 // pred_check
      %p191 = pneg %p190
    $region30: #{conv_forward.1} parent=5 // pred_check_branch
      %193 = sbr.rel (%p191) target = $region32
    $region31: #{conv_forward.1} parent=5 // pred_region
      // Predicated region
      $region33: #{conv_forward.1} parent=31 // pred_check
        %p194 = pneg %p45
      $region34: #{conv_forward.1} parent=31 // pred_check_branch
        %196 = sbr.rel (%p194) target = $region36
      $region35: #{conv_forward.1} parent=31 // pred_region
        %s197 = smul.u32 2, %s19
        %p198 = scmp.lt.s32.totalorder %s18, 1
        %s199 = scalar_select %p198, %s18, 1
        %p200 = scmp.lt.s32.totalorder %s197, 1
        %s201 = scalar_select %p200, %s197, 1
        %s202 = smul.addr %s199, 2
        %s203 = sadd.s32 %s201, %s202
        %s204 = smul.addr %s203, 4
        %s205 = scalar_lea.vmem %s0, %s204
        %s206 = smul.u32 2, %s19
      $region36: #{conv_forward.1} parent=31 // pred_fallthru
        _
    $region32: #{conv_forward.1} parent=5 // pred_fallthru
      _
    %p207 = scmp.le.s32.totalorder 1, %s11
    %p208 = scmp.lt.s32.totalorder %s11, 3
    %p209 = pnand %p207, %p208
    %p210 = pneg %p209
    // Predicated region
    $region37: #{conv_forward.1} parent=5 // pred_check
      _
    $region38: #{conv_forward.1} parent=5 // pred_check_branch
      %212 = sbr.rel (%p209) target = $region40
    $region39: #{conv_forward.1} parent=5 // pred_region
      %s213 = ssub.s32 %s11, 1
      %s214 = smul.u32 2, %s21
      %p215 = scmp.lt.s32.totalorder %s20, 1
      %s216 = scalar_select %p215, %s20, 1
      %p217 = scmp.lt.s32.totalorder %s214, 1
      %s218 = scalar_select %p217, %s214, 1
      %s219 = smul.addr %s216, 2
      %s220 = sadd.s32 %s218, %s219
      %s221 = smul.addr %s220, 4
      %s222 = scalar_lea.vmem %s0, %s221
      %p223 = pneg %p51
      %p224 = pneg %p48
      %p225 = pneg %p72
      %p226 = pneg %p69
      %p227 = pneg %p93
      %p228 = pneg %p90
      %p229 = pneg %p114
      %p230 = pneg %p111
      %p231 = pneg %p135
      %p232 = pneg %p132
      %p233 = pneg %p163
      %p234 = pneg %p160
      %s235 = smul.u32 2, %s21
      %p236 = scmp.lt.s32.totalorder %s20, 1
      %s237 = scalar_select %p236, %s20, 1
      %p238 = scmp.lt.s32.totalorder %s235, 1
      %s239 = scalar_select %p238, %s235, 1
      %s240 = smul.addr %s237, 2
      %s241 = sadd.s32 %s239, %s240
      %s242 = smul.addr %s241, 4
      %s243 = scalar_lea.vmem %s5, %s242
      %s244 = smul.u32 2, %s21
      %p245 = scmp.lt.s32.totalorder %s20, 1
      %s246 = scalar_select %p245, %s20, 1
      %p247 = scmp.lt.s32.totalorder %s244, 1
      %s248 = scalar_select %p247, %s244, 1
      %s249 = smul.addr %s246, 2
      %s250 = sadd.s32 %s248, %s249
      %s251 = smul.addr %s250, 4
      %s252 = scalar_lea.vmem %s0, %s251
      %s253 = smul.u32 2, %s21
      %s254 = smul.u32 2, %s21
      %p255 = scmp.lt.s32.totalorder %s20, 1
      %s256 = scalar_select %p255, %s20, 1
      %p257 = scmp.lt.s32.totalorder %s254, 1
      %s258 = scalar_select %p257, %s254, 1
      %s259 = smul.addr %s256, 2
      %s260 = sadd.s32 %s258, %s259
      %s261 = smul.addr %s260, 4
      %s262 = scalar_lea.vmem %s5, %s261
      %s263 = smul.u32 2, %s21
      %v264 = vld [vmem:[%s252] sm:$0xff]
      %v265 = vld [vmem:[%s1] sm:$0xff]
      %v266 = vld [vmem:[%s1 + $0x8] sm:$0xff]
      %v267 = vld [vmem:[%s1 + $0x10] sm:$0xff]
      %v268 = vld [vmem:[%s1 + $0x18] sm:$0xff]
      %v269 = vld [vmem:[%s2] sm:$0xff]
      %v270 = vld [vmem:[%s2 + $0x8] sm:$0xff]
      %v271 = vld [vmem:[%s2 + $0x10] sm:$0xff]
      %v272 = vld [vmem:[%s2 + $0x18] sm:$0xff]
      %274 = vset.pattern.permute.xlu0 0
      %275 = vperm.xlu0 %274, %v269
      %v276 = vpop.permute.xlu0 %275
      %279 = vset.pattern.permute.xlu0 0
      %280 = vperm.xlu0 %279, %v270
      %v281 = vpop.permute.xlu0 %280
      %284 = vset.pattern.permute.xlu0 0
      %285 = vperm.xlu0 %284, %v271
      %v286 = vpop.permute.xlu0 %285
      %289 = vset.pattern.permute.xlu0 0
      %290 = vperm.xlu0 %289, %v272
      %v291 = vpop.permute.xlu0 %290
      %294 = vst [vmem:[#allocation1] ss:$2 sm:$0xff] %v264
      %v295 = vld.sshfl [vmem:[#allocation1] sm:$0xff pattern:$0x75316420]
      %v296 = vld.sshfl [vmem:[#allocation1 + $0x8] sm:$0xff pattern:$0x75316420]
      %vm297 = vcmask 31744
      %v299 = vsel %vm297, %v265, 0
      %v302 = vsel %vm297, %v266, 0
      %v305 = vsel %vm297, %v267, 0
      %v308 = vsel %vm297, %v268, 0
      %vm310 = vcmask 1043456
      %v311 = vsel %vm310, %v295, 0
      %v313 = vsel %vm310, %v296, 0
      %315 = vmatpush.msra.mxu0 0.0
      %316 = vmatpush.msra.mxu0 0.0
      %317 = vmatpush.msra.mxu0 0.0
      %318 = vmatpush.msra.mxu0 0.0
      %319 = vmatpush.msra.mxu0 0.0
      %320 = vmatpush.msra.mxu0 0.0
      %321 = vmatpush.msra.mxu0 0.0
      %322 = vmatpush.msra.mxu0 0.0
      %323 = vmatpush.msra.mxu0 0.0
      %324 = vmatpush.msra.mxu0 0.0
      %325 = vmatpush.msra.mxu0 0.0
      %326 = vmatpush.msra.mxu0 0.0
      %327 = vmatpush.msra.mxu0 0.0
      %328 = vmatpush.msra.mxu0 0.0
      %329 = vmatpush.msra.mxu0 0.0
      %330 = vmatpush.msra.mxu0 %v311
      %331 = vmatmul.f32.gmra.mxu0 %v299
      %v332 = vpop.f32.mrf.mxu0
      %v333 = vadd.f32 %v276, %v332
      %334 = vmatmul.f32.gmra.mxu0 %v302
      %v335 = vpop.f32.mrf.mxu0
      %v336 = vadd.f32 %v281, %v335
      %337 = vmatmul.f32.gmra.mxu0 %v305
      %v338 = vpop.f32.mrf.mxu0
      %v339 = vadd.f32 %v286, %v338
      %340 = vmatmul.f32.gmra.mxu0 %v308
      %v341 = vpop.f32.mrf.mxu0
      %v342 = vadd.f32 %v291, %v341
      %343 = vdwg.mxu0
      %344 = vmatpush.msra.mxu0 0.0
      %345 = vmatpush.msra.mxu0 0.0
      %346 = vmatpush.msra.mxu0 0.0
      %347 = vmatpush.msra.mxu0 0.0
      %348 = vmatpush.msra.mxu0 0.0
      %349 = vmatpush.msra.mxu0 0.0
      %350 = vmatpush.msra.mxu0 0.0
      %351 = vmatpush.msra.mxu0 0.0
      %352 = vmatpush.msra.mxu0 0.0
      %353 = vmatpush.msra.mxu0 0.0
      %354 = vmatpush.msra.mxu0 0.0
      %355 = vmatpush.msra.mxu0 0.0
      %356 = vmatpush.msra.mxu0 0.0
      %357 = vmatpush.msra.mxu0 0.0
      %358 = vmatpush.msra.mxu0 0.0
      %359 = vmatpush.msra.mxu0 %v313
      %360 = vmatmul.f32.gmra.mxu0 %v299
      %v361 = vpop.f32.mrf.mxu0
      %v362 = vadd.f32 %v276, %v361
      %363 = vmatmul.f32.gmra.mxu0 %v302
      %v364 = vpop.f32.mrf.mxu0
      %v365 = vadd.f32 %v281, %v364
      %366 = vmatmul.f32.gmra.mxu0 %v305
      %v367 = vpop.f32.mrf.mxu0
      %v368 = vadd.f32 %v286, %v367
      %369 = vmatmul.f32.gmra.mxu0 %v308
      %v370 = vpop.f32.mrf.mxu0
      %v371 = vadd.f32 %v291, %v370
      %372 = vdwg.mxu0
      %v373 = vmul.f32 %v333, 0.5
      %v374 = vmul.f32 %v362, 0.5
      %v375 = vmul.f32 %v336, 0.5
      %v376 = vmul.f32 %v365, 0.5
      %v377 = vmul.f32 %v339, 0.5
      %v378 = vmul.f32 %v368, 0.5
      %v379 = vmul.f32 %v342, 0.5
      %v380 = vmul.f32 %v371, 0.5
      %v381 = vmul.f32 %v333, 0.70710677
      %v382 = vmul.f32 %v362, 0.70710677
      %v383 = vmul.f32 %v336, 0.70710677
      %v384 = vmul.f32 %v365, 0.70710677
      %v385 = vmul.f32 %v339, 0.70710677
      %v386 = vmul.f32 %v368, 0.70710677
      %v387 = vmul.f32 %v342, 0.70710677
      %v388 = vmul.f32 %v371, 0.70710677
      %vm389 = vcmp.ge.f32.partialorder %v381, 0.0
      %vm390 = vcmp.ge.f32.partialorder %v382, 0.0
      %vm391 = vcmp.ge.f32.partialorder %v383, 0.0
      %vm392 = vcmp.ge.f32.partialorder %v384, 0.0
      %vm393 = vcmp.ge.f32.partialorder %v385, 0.0
      %vm394 = vcmp.ge.f32.partialorder %v386, 0.0
      %vm395 = vcmp.ge.f32.partialorder %v387, 0.0
      %vm396 = vcmp.ge.f32.partialorder %v388, 0.0
      %v397 = vsel %vm389, 1.0, -1.0
      %v398 = vsel %vm390, 1.0, -1.0
      %v399 = vsel %vm391, 1.0, -1.0
      %v400 = vsel %vm392, 1.0, -1.0
      %v401 = vsel %vm393, 1.0, -1.0
      %v402 = vsel %vm394, 1.0, -1.0
      %v403 = vsel %vm395, 1.0, -1.0
      %v404 = vsel %vm396, 1.0, -1.0
      %v405 = vand.u32 2147483647, %v381
      %v406 = vand.u32 2147483647, %v382
      %v407 = vand.u32 2147483647, %v383
      %v408 = vand.u32 2147483647, %v384
      %v409 = vand.u32 2147483647, %v385
      %v410 = vand.u32 2147483647, %v386
      %v411 = vand.u32 2147483647, %v387
      %v412 = vand.u32 2147483647, %v388
      %v413 = vmul.f32 %v405, 0.3275911
      %v414 = vmul.f32 %v406, 0.3275911
      %v415 = vmul.f32 %v407, 0.3275911
      %v416 = vmul.f32 %v408, 0.3275911
      %v417 = vmul.f32 %v409, 0.3275911
      %v418 = vmul.f32 %v410, 0.3275911
      %v419 = vmul.f32 %v411, 0.3275911
      %v420 = vmul.f32 %v412, 0.3275911
      %v421 = vadd.f32 %v413, 1.0
      %v422 = vadd.f32 %v414, 1.0
      %v423 = vadd.f32 %v415, 1.0
      %v424 = vadd.f32 %v416, 1.0
      %v425 = vadd.f32 %v417, 1.0
      %v426 = vadd.f32 %v418, 1.0
      %v427 = vadd.f32 %v419, 1.0
      %v428 = vadd.f32 %v420, 1.0
      %v429 = vrcp.pop %v421
      %v430 = vmul.f32 %v421, %v429
      %v431 = vsub.f32 1.0, %v430
      %v432 = vmul.f32 %v429, %v431
      %v433 = vadd.f32 %v429, %v432
      %vm434 = vweird.f32 %v421
      %vm435 = vweird.f32 %v429
      %vm436 = vmor %vm434, %vm435
      %v437 = vsel %vm436, %v429, %v433
      %v438 = vand.u32 2147483647, %v421
      %vm439 = vcmp.eq.f32.partialorder %v438, 8.507059e+37
      %v440 = vand.u32 %v421, 2147483648
      %v441 = vor.u32 1.1754944e-38, %v440
      %v442 = vsel %vm439, %v441, %v437
      %v443 = vmul.f32 1.0, %v442
      %v444 = vrcp.pop %v422
      %v445 = vmul.f32 %v422, %v444
      %v446 = vsub.f32 1.0, %v445
      %v447 = vmul.f32 %v444, %v446
      %v448 = vadd.f32 %v444, %v447
      %vm449 = vweird.f32 %v422
      %vm450 = vweird.f32 %v444
      %vm451 = vmor %vm449, %vm450
      %v452 = vsel %vm451, %v444, %v448
      %v453 = vand.u32 2147483647, %v422
      %vm454 = vcmp.eq.f32.partialorder %v453, 8.507059e+37
      %v455 = vand.u32 %v422, 2147483648
      %v456 = vor.u32 1.1754944e-38, %v455
      %v457 = vsel %vm454, %v456, %v452
      %v458 = vmul.f32 1.0, %v457
      %v459 = vrcp.pop %v423
      %v460 = vmul.f32 %v423, %v459
      %v461 = vsub.f32 1.0, %v460
      %v462 = vmul.f32 %v459, %v461
      %v463 = vadd.f32 %v459, %v462
      %vm464 = vweird.f32 %v423
      %vm465 = vweird.f32 %v459
      %vm466 = vmor %vm464, %vm465
      %v467 = vsel %vm466, %v459, %v463
      %v468 = vand.u32 2147483647, %v423
      %vm469 = vcmp.eq.f32.partialorder %v468, 8.507059e+37
      %v470 = vand.u32 %v423, 2147483648
      %v471 = vor.u32 1.1754944e-38, %v470
      %v472 = vsel %vm469, %v471, %v467
      %v473 = vmul.f32 1.0, %v472
      %v474 = vrcp.pop %v424
      %v475 = vmul.f32 %v424, %v474
      %v476 = vsub.f32 1.0, %v475
      %v477 = vmul.f32 %v474, %v476
      %v478 = vadd.f32 %v474, %v477
      %vm479 = vweird.f32 %v424
      %vm480 = vweird.f32 %v474
      %vm481 = vmor %vm479, %vm480
      %v482 = vsel %vm481, %v474, %v478
      %v483 = vand.u32 2147483647, %v424
      %vm484 = vcmp.eq.f32.partialorder %v483, 8.507059e+37
      %v485 = vand.u32 %v424, 2147483648
      %v486 = vor.u32 1.1754944e-38, %v485
      %v487 = vsel %vm484, %v486, %v482
      %v488 = vmul.f32 1.0, %v487
      %v489 = vrcp.pop %v425
      %v490 = vmul.f32 %v425, %v489
      %v491 = vsub.f32 1.0, %v490
      %v492 = vmul.f32 %v489, %v491
      %v493 = vadd.f32 %v489, %v492
      %vm494 = vweird.f32 %v425
      %vm495 = vweird.f32 %v489
      %vm496 = vmor %vm494, %vm495
      %v497 = vsel %vm496, %v489, %v493
      %v498 = vand.u32 2147483647, %v425
      %vm499 = vcmp.eq.f32.partialorder %v498, 8.507059e+37
      %v500 = vand.u32 %v425, 2147483648
      %v501 = vor.u32 1.1754944e-38, %v500
      %v502 = vsel %vm499, %v501, %v497
      %v503 = vmul.f32 1.0, %v502
      %v504 = vrcp.pop %v426
      %v505 = vmul.f32 %v426, %v504
      %v506 = vsub.f32 1.0, %v505
      %v507 = vmul.f32 %v504, %v506
      %v508 = vadd.f32 %v504, %v507
      %vm509 = vweird.f32 %v426
      %vm510 = vweird.f32 %v504
      %vm511 = vmor %vm509, %vm510
      %v512 = vsel %vm511, %v504, %v508
      %v513 = vand.u32 2147483647, %v426
      %vm514 = vcmp.eq.f32.partialorder %v513, 8.507059e+37
      %v515 = vand.u32 %v426, 2147483648
      %v516 = vor.u32 1.1754944e-38, %v515
      %v517 = vsel %vm514, %v516, %v512
      %v518 = vmul.f32 1.0, %v517
      %v519 = vrcp.pop %v427
      %v520 = vmul.f32 %v427, %v519
      %v521 = vsub.f32 1.0, %v520
      %v522 = vmul.f32 %v519, %v521
      %v523 = vadd.f32 %v519, %v522
      %vm524 = vweird.f32 %v427
      %vm525 = vweird.f32 %v519
      %vm526 = vmor %vm524, %vm525
      %v527 = vsel %vm526, %v519, %v523
      %v528 = vand.u32 2147483647, %v427
      %vm529 = vcmp.eq.f32.partialorder %v528, 8.507059e+37
      %v530 = vand.u32 %v427, 2147483648
      %v531 = vor.u32 1.1754944e-38, %v530
      %v532 = vsel %vm529, %v531, %v527
      %v533 = vmul.f32 1.0, %v532
      %v534 = vrcp.pop %v428
      %v535 = vmul.f32 %v428, %v534
      %v536 = vsub.f32 1.0, %v535
      %v537 = vmul.f32 %v534, %v536
      %v538 = vadd.f32 %v534, %v537
      %vm539 = vweird.f32 %v428
      %vm540 = vweird.f32 %v534
      %vm541 = vmor %vm539, %vm540
      %v542 = vsel %vm541, %v534, %v538
      %v543 = vand.u32 2147483647, %v428
      %vm544 = vcmp.eq.f32.partialorder %v543, 8.507059e+37
      %v545 = vand.u32 %v428, 2147483648
      %v546 = vor.u32 1.1754944e-38, %v545
      %v547 = vsel %vm544, %v546, %v542
      %v548 = vmul.f32 1.0, %v547
      %v549 = vmul.f32 %v443, 1.0614054
      %v550 = vmul.f32 %v458, 1.0614054
      %v551 = vmul.f32 %v473, 1.0614054
      %v552 = vmul.f32 %v488, 1.0614054
      %v553 = vmul.f32 %v503, 1.0614054
      %v554 = vmul.f32 %v518, 1.0614054
      %v555 = vmul.f32 %v533, 1.0614054
      %v556 = vmul.f32 %v548, 1.0614054
      %v557 = vadd.f32 %v549, -1.4531521
      %v558 = vadd.f32 %v550, -1.4531521
      %v559 = vadd.f32 %v551, -1.4531521
      %v560 = vadd.f32 %v552, -1.4531521
      %v561 = vadd.f32 %v553, -1.4531521
      %v562 = vadd.f32 %v554, -1.4531521
      %v563 = vadd.f32 %v555, -1.4531521
      %v564 = vadd.f32 %v556, -1.4531521
      %v565 = vmul.f32 %v557, %v443
      %v566 = vmul.f32 %v558, %v458
      %v567 = vmul.f32 %v559, %v473
      %v568 = vmul.f32 %v560, %v488
      %v569 = vmul.f32 %v561, %v503
      %v570 = vmul.f32 %v562, %v518
      %v571 = vmul.f32 %v563, %v533
      %v572 = vmul.f32 %v564, %v548
      %v573 = vadd.f32 %v565, 1.4214138
      %v574 = vadd.f32 %v566, 1.4214138
      %v575 = vadd.f32 %v567, 1.4214138
      %v576 = vadd.f32 %v568, 1.4214138
      %v577 = vadd.f32 %v569, 1.4214138
      %v578 = vadd.f32 %v570, 1.4214138
      %v579 = vadd.f32 %v571, 1.4214138
      %v580 = vadd.f32 %v572, 1.4214138
      %v581 = vmul.f32 %v573, %v443
      %v582 = vmul.f32 %v574, %v458
      %v583 = vmul.f32 %v575, %v473
      %v584 = vmul.f32 %v576, %v488
      %v585 = vmul.f32 %v577, %v503
      %v586 = vmul.f32 %v578, %v518
      %v587 = vmul.f32 %v579, %v533
      %v588 = vmul.f32 %v580, %v548
      %v589 = vadd.f32 %v581, -0.28449672
      %v590 = vadd.f32 %v582, -0.28449672
      %v591 = vadd.f32 %v583, -0.28449672
      %v592 = vadd.f32 %v584, -0.28449672
      %v593 = vadd.f32 %v585, -0.28449672
      %v594 = vadd.f32 %v586, -0.28449672
      %v595 = vadd.f32 %v587, -0.28449672
      %v596 = vadd.f32 %v588, -0.28449672
      %v597 = vmul.f32 %v589, %v443
      %v598 = vmul.f32 %v590, %v458
      %v599 = vmul.f32 %v591, %v473
      %v600 = vmul.f32 %v592, %v488
      %v601 = vmul.f32 %v593, %v503
      %v602 = vmul.f32 %v594, %v518
      %v603 = vmul.f32 %v595, %v533
      %v604 = vmul.f32 %v596, %v548
      %v605 = vadd.f32 %v597, 0.2548296
      %v606 = vadd.f32 %v598, 0.2548296
      %v607 = vadd.f32 %v599, 0.2548296
      %v608 = vadd.f32 %v600, 0.2548296
      %v609 = vadd.f32 %v601, 0.2548296
      %v610 = vadd.f32 %v602, 0.2548296
      %v611 = vadd.f32 %v603, 0.2548296
      %v612 = vadd.f32 %v604, 0.2548296
      %v613 = vmul.f32 %v605, %v443
      %v614 = vmul.f32 %v606, %v458
      %v615 = vmul.f32 %v607, %v473
      %v616 = vmul.f32 %v608, %v488
      %v617 = vmul.f32 %v609, %v503
      %v618 = vmul.f32 %v610, %v518
      %v619 = vmul.f32 %v611, %v533
      %v620 = vmul.f32 %v612, %v548
      %v621 = vsub.f32 0.0, %v405
      %v622 = vsub.f32 0.0, %v406
      %v623 = vsub.f32 0.0, %v407
      %v624 = vsub.f32 0.0, %v408
      %v625 = vsub.f32 0.0, %v409
      %v626 = vsub.f32 0.0, %v410
      %v627 = vsub.f32 0.0, %v411
      %v628 = vsub.f32 0.0, %v412
      %v629 = vmul.f32 %v621, %v405
      %v630 = vmul.f32 %v622, %v406
      %v631 = vmul.f32 %v623, %v407
      %v632 = vmul.f32 %v624, %v408
      %v633 = vmul.f32 %v625, %v409
      %v634 = vmul.f32 %v626, %v410
      %v635 = vmul.f32 %v627, %v411
      %v636 = vmul.f32 %v628, %v412
      %v637 = vmul.f32 %v629, 1.442695
      %v638 = vpow.pop %v637
      %v639 = vmul.f32 %v630, 1.442695
      %v640 = vpow.pop %v639
      %v641 = vmul.f32 %v631, 1.442695
      %v642 = vpow.pop %v641
      %v643 = vmul.f32 %v632, 1.442695
      %v644 = vpow.pop %v643
      %v645 = vmul.f32 %v633, 1.442695
      %v646 = vpow.pop %v645
      %v647 = vmul.f32 %v634, 1.442695
      %v648 = vpow.pop %v647
      %v649 = vmul.f32 %v635, 1.442695
      %v650 = vpow.pop %v649
      %v651 = vmul.f32 %v636, 1.442695
      %v652 = vpow.pop %v651
      %v653 = vmul.f32 %v613, %v638
      %v654 = vmul.f32 %v614, %v640
      %v655 = vmul.f32 %v615, %v642
      %v656 = vmul.f32 %v616, %v644
      %v657 = vmul.f32 %v617, %v646
      %v658 = vmul.f32 %v618, %v648
      %v659 = vmul.f32 %v619, %v650
      %v660 = vmul.f32 %v620, %v652
      %v661 = vsub.f32 1.0, %v653
      %v662 = vsub.f32 1.0, %v654
      %v663 = vsub.f32 1.0, %v655
      %v664 = vsub.f32 1.0, %v656
      %v665 = vsub.f32 1.0, %v657
      %v666 = vsub.f32 1.0, %v658
      %v667 = vsub.f32 1.0, %v659
      %v668 = vsub.f32 1.0, %v660
      %v669 = vmul.f32 %v397, %v661
      %v670 = vmul.f32 %v398, %v662
      %v671 = vmul.f32 %v399, %v663
      %v672 = vmul.f32 %v400, %v664
      %v673 = vmul.f32 %v401, %v665
      %v674 = vmul.f32 %v402, %v666
      %v675 = vmul.f32 %v403, %v667
      %v676 = vmul.f32 %v404, %v668
      %v677 = vadd.f32 %v669, 1.0
      %v678 = vadd.f32 %v670, 1.0
      %v679 = vadd.f32 %v671, 1.0
      %v680 = vadd.f32 %v672, 1.0
      %v681 = vadd.f32 %v673, 1.0
      %v682 = vadd.f32 %v674, 1.0
      %v683 = vadd.f32 %v675, 1.0
      %v684 = vadd.f32 %v676, 1.0
      %v685 = vmul.f32 %v373, %v677
      %v686 = vmul.f32 %v374, %v678
      %v687 = vmul.f32 %v375, %v679
      %v688 = vmul.f32 %v376, %v680
      %v689 = vmul.f32 %v377, %v681
      %v690 = vmul.f32 %v378, %v682
      %v691 = vmul.f32 %v379, %v683
      %v692 = vmul.f32 %v380, %v684
      %v693 = vld [vmem:[%s3] sm:$0xf]
      %v694 = vld [vmem:[%s4] sm:$0xf]
      %696 = vset.pattern.permute.xlu0 0
      %697 = vperm.xlu0 %696, %v694
      %v698 = vpop.permute.xlu0 %697
      %vm700 = vcmask 261120
      %v702 = vsel %vm700, %v693, 0
      %704 = vmatpush.msra.mxu0 0.0
      %705 = vmatpush.msra.mxu0 0.0
      %706 = vmatpush.msra.mxu0 0.0
      %707 = vmatpush.msra.mxu0 0.0
      %708 = vmatpush.msra.mxu0 0.0
      %709 = vmatpush.msra.mxu0 0.0
      %710 = vmatpush.msra.mxu0 0.0
      %711 = vmatpush.msra.mxu0 0.0
      %712 = vmatpush.msra.mxu0 0.0
      %713 = vmatpush.msra.mxu0 0.0
      %714 = vmatpush.msra.mxu0 0.0
      %715 = vmatpush.msra.mxu0 0.0
      %716 = vmatpush.msra.mxu0 %v691
      %717 = vmatpush.msra.mxu0 %v689
      %718 = vmatpush.msra.mxu0 %v687
      %719 = vmatpush.msra.mxu0 %v685
      %720 = vmatmul.f32.gmra.mxu0 %v702
      %v721 = vpop.f32.mrf.mxu0
      %v722 = vadd.f32 %v698, %v721
      %723 = vdwg.mxu0
      %724 = vmatpush.msra.mxu0 0.0
      %725 = vmatpush.msra.mxu0 0.0
      %726 = vmatpush.msra.mxu0 0.0
      %727 = vmatpush.msra.mxu0 0.0
      %728 = vmatpush.msra.mxu0 0.0
      %729 = vmatpush.msra.mxu0 0.0
      %730 = vmatpush.msra.mxu0 0.0
      %731 = vmatpush.msra.mxu0 0.0
      %732 = vmatpush.msra.mxu0 0.0
      %733 = vmatpush.msra.mxu0 0.0
      %734 = vmatpush.msra.mxu0 0.0
      %735 = vmatpush.msra.mxu0 0.0
      %736 = vmatpush.msra.mxu0 %v692
      %737 = vmatpush.msra.mxu0 %v690
      %738 = vmatpush.msra.mxu0 %v688
      %739 = vmatpush.msra.mxu0 %v686
      %740 = vmatmul.f32.gmra.mxu0 %v702
      %v741 = vpop.f32.mrf.mxu0
      %v742 = vadd.f32 %v698, %v741
      %743 = vdwg.mxu0
      %v746 = vrot.slane %v742, 4
      %v747 = vsel %vm310, %v722, %v746
      %749 = vst [vmem:[%s262] sm:$0xff] %v747
      %s750 = smul.u32 2, %s21
      %p751 = scmp.lt.s32.totalorder %s20, 1
      %s752 = scalar_select %p751, %s20, 1
      %p753 = scmp.lt.s32.totalorder %s750, 1
      %s754 = scalar_select %p753, %s750, 1
      %s755 = smul.addr %s752, 2
      %s756 = sadd.s32 %s754, %s755
      %s757 = smul.addr %s756, 4
      %s758 = scalar_lea.vmem %s5, %s757
      // Predicated region
      $region41: #{conv_forward.1} parent=39 // pred_check
        %p759 = pneg %p160
      $region42: #{conv_forward.1} parent=39 // pred_check_branch
        %761 = sbr.rel (%p759) target = $region44
      $region43: #{conv_forward.1} parent=39 // pred_region
        %s762 = smul.u32 2, %s21
      $region44: #{conv_forward.1} parent=39 // pred_fallthru
        _
    $region40: #{conv_forward.1} parent=5 // pred_fallthru
      _
    %p763 = scmp.le.s32.totalorder 2, %s11
    // Predicated region
    $region45: #{conv_forward.1} parent=5 // pred_check
      %p764 = pneg %p763
    $region46: #{conv_forward.1} parent=5 // pred_check_branch
      %766 = sbr.rel (%p764) target = $region48
    $region47: #{conv_forward.1} parent=5 // pred_region
      %s767 = ssub.s32 %s11, 2
      // Predicated region
      $region49: #{conv_forward.1} parent=47 // pred_check
        %p768 = pneg %p166
      $region50: #{conv_forward.1} parent=47 // pred_check_branch
        %770 = sbr.rel (%p768) target = $region52
      $region51: #{conv_forward.1} parent=47 // pred_region
        %s771 = smul.u32 2, %s23
        %p772 = scmp.lt.s32.totalorder %s22, 1
        %s773 = scalar_select %p772, %s22, 1
        %p774 = scmp.lt.s32.totalorder %s771, 1
        %s775 = scalar_select %p774, %s771, 1
        %s776 = smul.addr %s773, 2
        %s777 = sadd.s32 %s775, %s776
        %s778 = smul.addr %s777, 4
        %s779 = scalar_lea.vmem %s5, %s778
      $region52: #{conv_forward.1} parent=47 // pred_fallthru
        _
    $region48: #{conv_forward.1} parent=5 // pred_fallthru
      _
  $region6: #{conv_forward.1} parent=0 // loop_footer
    %s15 = sadd.s32 1, %s11
  $region7: #{conv_forward.1} parent=0 // loop_footer_branch
    %10 = sbr.rel target = $region3
  $region8: #{conv_forward.1} parent=0 // loop_exit
    _

</llo_original>
